<compile_context>
chip_gen: v7x
topology: tpu7x:2x2x1
jax: 0.10.0
libtpu: 0.0.40
codegen_flags: <defaults>
</compile_context>

<pallas_src>
import jax
import jax.numpy as jnp
from jax.experimental import pallas as pl
from jax.experimental.pallas import tpu as pltpu

F_IN = 17
F_OUT = 17
_LANE = 128
_SUBLANE = 8
# Batch tile sized so each activation block is ~1-4 MiB (32768*17*4B ~= 2.2 MiB
# for f32): per measured tile-size sweeps, >=1 MiB blocks reach 85%+ of the HBM
# roofline while total VMEM (double-buffered in + out + tiny weights) stays
# well under the 32 MiB scoped default on v5e/v6e/v7x.
_MAX_TB = 32768
# Keep at least this many grid steps so v7x's 2 TensorCores both get tiles and
# each can still software-pipeline.
_MIN_GRID_STEPS = 8


def _round_up(n, m):
    return ((n + m - 1) // m) * m


def _sublane_multiple(dtype):
    # Packed dtypes (bf16/fp16/int8/...) want the second-minor block dim to be
    # a multiple of the packing factor: 8 (f32), 16 (bf16), 32 (int8/fp8).
    return _SUBLANE * max(1, 4 // jnp.dtype(dtype).itemsize)


def _pick_tile(batch, multiple):
    """Largest tile <= _MAX_TB that (for big batches) still yields
    >= _MIN_GRID_STEPS grid steps, rounded to the required HW multiple."""
    tb = _round_up(max(pl.cdiv(batch, _MIN_GRID_STEPS), 1), multiple)
    tb = min(tb, _MAX_TB)
    tb = min(tb, _round_up(batch, multiple))  # never larger than (rounded) batch
    return max(tb, multiple)


# ---------------------------------------------------------------------------
# Kernels
# ---------------------------------------------------------------------------
def _gen_kernel_bmajor(x_ref, wt_ref, b_ref, o_ref):
    # x_ref : (TB, F_IN)  activations in their native dtype (batch-major)
    # wt_ref: (F_IN, F_OUT) pre-transposed Linear weight, resident in VMEM
    # b_ref : (1, F_OUT)    bias row (broadcast over batch rows)
    # o_ref : (TB, F_OUT)   output tile
    x = x_ref[...].astype(jnp.float32)           # in-kernel upcast == x.float()
    y = jnp.dot(x, wt_ref[...], preferred_element_type=jnp.float32)
    o_ref[...] = jnp.tanh(y + b_ref[...])


def _gen_kernel_fmajor(xt_ref, w_ref, b_ref, o_ref):
    # xt_ref: (F_IN, TB)   activations with batch on the lane axis (lane-dense)
    # w_ref : (F_OUT, F_IN) PyTorch-convention weight, resident in VMEM
    # b_ref : (F_OUT, 1)    bias column (broadcast over lanes)
    # o_ref : (F_OUT, TB)   y^T tile
    x = xt_ref[...].astype(jnp.float32)
    y = jnp.dot(w_ref[...], x, preferred_element_type=jnp.float32)
    o_ref[...] = jnp.tanh(y + b_ref[...])


# ---------------------------------------------------------------------------
# Wrappers
# ---------------------------------------------------------------------------
def generator_forward(x, weight, bias):
    """Pallas equivalent of nn.Sequential(nn.Linear(17,17), nn.Tanh())(x.float()).

    Batch-major path: (B, 17) in -> (B, 17) out, no wrapper-side pad or
    transpose; the float32 cast happens inside the kernel.

    Args:
      x:      (B, 17) any float dtype.
      weight: (17, 17) PyTorch Linear weight (out_features, in_features).
      bias:   (17,)    Linear bias.
    Returns:
      (B, 17) float32
    """
    B = x.shape[0]
    assert x.shape[1] == F_IN
    wt = weight.astype(jnp.float32).T            # (F_IN, F_OUT), done once (17x17)
    b = bias.astype(jnp.float32).reshape(1, F_OUT)

    TB = _pick_tile(B, _sublane_multiple(x.dtype))
    grid = (pl.cdiv(B, TB),)                     # ragged last tile handled by Pallas

    cost = pl.CostEstimate(
        flops=2 * B * F_IN * F_OUT,
        transcendentals=B * F_OUT,
        bytes_accessed=(B * F_IN * jnp.dtype(x.dtype).itemsize
                        + 4 * (F_IN * F_OUT + F_OUT + B * F_OUT)),
    )

    return pl.pallas_call(
        _gen_kernel_bmajor,
        out_shape=jax.ShapeDtypeStruct((B, F_OUT), jnp.float32),
        grid_spec=pltpu.PrefetchScalarGridSpec(
            num_scalar_prefetch=0,
            grid=grid,
            in_specs=[
                # Batch-tiled activations. (If profiles show exposed DMA,
                # add pipeline_mode=pl.Buffered(3) here; VMEM headroom is ample.)
                pl.BlockSpec((TB, F_IN), lambda i: (i, 0)),
                # Weight & bias: same block every step -> stay resident in VMEM.
                pl.BlockSpec((F_IN, F_OUT), lambda i: (0, 0)),
                pl.BlockSpec((1, F_OUT), lambda i: (0, 0)),
            ],
            out_specs=pl.BlockSpec((TB, F_OUT), lambda i: (i, 0)),
        ),
        compiler_params=pltpu.CompilerParams(
            # Independent batch tiles: shard across TensorCores on v7x.
            dimension_semantics=("parallel",),
        ),
        cost_estimate=cost,
    )(x, wt, b)


def generator_forward_fmajor(xt, weight, bias):
    """Feature-major variant for callers that keep activations as (17, B)
    end-to-end: lane-dense (full 128-lane) loads/stores AND no transposes.

    Args:
      xt:     (17, B) any float dtype (x transposed).
      weight: (17, 17), bias: (17,)
    Returns:
      (17, B) float32  (== generator_forward(xt.T, ...).T)
    """
    assert xt.shape[0] == F_IN
    B = xt.shape[1]
    w = weight.astype(jnp.float32)
    b = bias.astype(jnp.float32).reshape(F_OUT, 1)

    TB = _pick_tile(B, _LANE)
    grid = (pl.cdiv(B, TB),)

    cost = pl.CostEstimate(
        flops=2 * B * F_IN * F_OUT,
        transcendentals=B * F_OUT,
        bytes_accessed=(B * F_IN * jnp.dtype(xt.dtype).itemsize
                        + 4 * (F_IN * F_OUT + F_OUT + B * F_OUT)),
    )

    return pl.pallas_call(
        _gen_kernel_fmajor,
        out_shape=jax.ShapeDtypeStruct((F_OUT, B), jnp.float32),
        grid_spec=pltpu.PrefetchScalarGridSpec(
            num_scalar_prefetch=0,
            grid=grid,
            in_specs=[
                pl.BlockSpec((F_IN, TB), lambda i: (0, i)),
                pl.BlockSpec((F_OUT, F_IN), lambda i: (0, 0)),
                pl.BlockSpec((F_OUT, 1), lambda i: (0, 0)),
            ],
            out_specs=pl.BlockSpec((F_OUT, TB), lambda i: (0, i)),
        ),
        compiler_params=pltpu.CompilerParams(
            dimension_semantics=("parallel",),
        ),
        cost_estimate=cost,
    )(xt, w, b)


if __name__ == "__main__":
    key = jax.random.PRNGKey(0)
    k_w, k_b, k_x1, k_x2 = jax.random.split(key, 4)

    # Deterministic synthetic parameters (shapes per nn.Linear(17, 17)).
    # PyTorch default init is U(-1/sqrt(fan_in), 1/sqrt(fan_in)); mimic that range.
    bound = 1.0 / jnp.sqrt(jnp.float32(F_IN))
    weight = jax.random.uniform(k_w, (F_OUT, F_IN), jnp.float32, -bound, bound)
    bias = jax.random.uniform(k_b, (F_OUT,), jnp.float32, -bound, bound)

    def ref(xv):
        return jnp.tanh(xv.astype(jnp.float32) @ weight.T + bias)

    # 1) Small batch: single tile, exact fit.
    x1 = jax.random.normal(k_x1, (8, F_IN), jnp.float32)
    out1 = jax.block_until_ready(generator_forward(x1, weight, bias))
    assert out1.shape == (8, F_OUT) and out1.dtype == jnp.float32
    assert jnp.allclose(out1, ref(x1), atol=5e-5), "mismatch vs reference (B=8)"

    # 2) Larger batch with a ragged last tile (no wrapper-side pad).
    x2 = jax.random.normal(k_x2, (2500, F_IN), jnp.float32)
    out2 = jax.block_until_ready(generator_forward(x2, weight, bias))
    assert out2.shape == (2500, F_OUT)
    assert jnp.allclose(out2, ref(x2), atol=5e-5), "mismatch vs reference (B=2500)"

    # 3) bf16 input: the f32 upcast happens inside the kernel (half input DMA).
    x3 = x2.astype(jnp.bfloat16)
    out3 = jax.block_until_ready(generator_forward(x3, weight, bias))
    assert jnp.allclose(out3, ref(x3), atol=5e-5), "mismatch vs reference (bf16)"

    # 4) Feature-major (17, B) variant: lane-dense, no transposes anywhere.
    out4 = jax.block_until_ready(generator_forward_fmajor(x2.T, weight, bias))
    assert out4.shape == (F_OUT, 2500)
    assert jnp.allclose(out4.T, ref(x2), atol=5e-5), "mismatch vs reference (fmajor)"

    print("KERNEL_OK")
</pallas_src>

<mosaic_0001>
module attributes {stable_mosaic.version = 11 : i64} {
  func.func @_gen_kernel_bmajor(%arg0: i32, %arg1: memref<8x17xf32, #tpu.memory_space<vmem>>, %arg2: memref<17x17xf32, #tpu.memory_space<vmem>>, %arg3: memref<1x17xf32, #tpu.memory_space<vmem>>, %arg4: memref<8x17xf32, #tpu.memory_space<vmem>>) attributes {dimension_semantics = [#tpu.dimension_semantics<parallel>], iteration_bounds = array<i64: 1>, scalar_prefetch = 0 : i64, scratch_operands = 0 : i64, tpu.core_type = #tpu.core_type<tc>, window_params = [{transform_indices = @transform_0, window_bounds = array<i64: 8, 17>}, {pipeline_mode = #tpu.pipeline_mode<synchronous>, transform_indices = @transform_1, window_bounds = array<i64: 17, 17>}, {pipeline_mode = #tpu.pipeline_mode<synchronous>, transform_indices = @transform_2, window_bounds = array<i64: 1, 17>}, {transform_indices = @transform_3, window_bounds = array<i64: 8, 17>}]} {
    %c0 = arith.constant 0 : index
    %c0_0 = arith.constant 0 : index
    %0 = vector.load %arg1[%c0, %c0_0] : memref<8x17xf32, #tpu.memory_space<vmem>>, vector<8x17xf32>
    %c0_1 = arith.constant 0 : index
    %c0_2 = arith.constant 0 : index
    %1 = vector.load %arg2[%c0_1, %c0_2] : memref<17x17xf32, #tpu.memory_space<vmem>>, vector<17x17xf32>
    %cst = arith.constant dense<0.000000e+00> : vector<8x17xf32>
    %2 = tpu.matmul %0, %1, %cst {dimension_numbers = #tpu.dot_dimension_numbers<[1], [0], [0], [1], [0, 0, 1, 1], [], []>} : vector<8x17xf32>, vector<17x17xf32>, vector<8x17xf32> -> vector<8x17xf32>
    %c0_3 = arith.constant 0 : index
    %c0_4 = arith.constant 0 : index
    %3 = vector.load %arg3[%c0_3, %c0_4] : memref<1x17xf32, #tpu.memory_space<vmem>>, vector<1x17xf32>
    %4 = vector.broadcast %3 : vector<1x17xf32> to vector<8x17xf32>
    %5 = arith.addf %2, %4 : vector<8x17xf32>
    %6 = math.tanh %5 : vector<8x17xf32>
    %c0_5 = arith.constant 0 : index
    %c0_6 = arith.constant 0 : index
    %7 = vector.load %arg4[%c0_5, %c0_6] : memref<8x17xf32, #tpu.memory_space<vmem>>, vector<8x17xf32>
    tpu.vector_store %arg4[%c0_5, %c0_6], %6 {strides = array<i32>} : memref<8x17xf32, #tpu.memory_space<vmem>>, vector<8x17xf32>,
    return
  }
  func.func @transform_0(%arg0: i32) -> (i32, i32) {
    %c0_i32 = arith.constant 0 : i32
    %c0_i32_0 = arith.constant 0 : i32
    return %arg0, %c0_i32 : i32, i32
  }
  func.func @transform_1(%arg0: i32) -> (i32, i32) {
    %c0_i32 = arith.constant 0 : i32
    %c0_i32_0 = arith.constant 0 : i32
    %c0_i32_1 = arith.constant 0 : i32
    return %c0_i32, %c0_i32_0 : i32, i32
  }
  func.func @transform_2(%arg0: i32) -> (i32, i32) {
    %c0_i32 = arith.constant 0 : i32
    %c0_i32_0 = arith.constant 0 : i32
    %c0_i32_1 = arith.constant 0 : i32
    return %c0_i32, %c0_i32_0 : i32, i32
  }
  func.func @transform_3(%arg0: i32) -> (i32, i32) {
    %c0_i32 = arith.constant 0 : i32
    %c0_i32_0 = arith.constant 0 : i32
    return %arg0, %c0_i32 : i32, i32
  }
}

</mosaic_0001>

<llo_original>
// kernel: tpu_custom_call.1
$region0: #{tpu_custom_call.1}
  #allocation0 [shape = 'u32[]', space=smem, size = 0x4, offset = 0x4, fixed_abs, tag = 'smem constant byte address 0x4 - core index']
  #allocation1 [shape = 'u32[144,128]{1,0:T(1,128)}', space=vmem, size = 0x12000, scoped, tag = 'internal scratch']
  %s0 = inlined_call_operand.hbm [shape: f32[8,17], index: 0, kind: input, shape index: {}]
  %s1 = inlined_call_operand.hbm [shape: f32[17,17], index: 1, kind: input, shape index: {}]
  %s2 = inlined_call_operand.vmem [shape: f32[1,17], index: 2, kind: input, shape index: {}]
  %s3 = inlined_call_operand.hbm [shape: f32[8,17], index: 3, kind: output, shape index: {}]
  %s4 = sld [smem:[#allocation0]]
  $region30: #{tpu_custom_call.1} parent=0
    _
  %s6 = ssub.s32 1, %s4
  %s7 = scalar_select 0, %s6, %s4
  $region1: #{tpu_custom_call.1} parent=0
    #allocation2 [shape = 'u8[4096]{0}', space=vmem, size = 0x1000, scoped, tag = 'input window, operand 0, single buffered']
    #allocation3 [shape = 's32[1]{0}', space=sflag, size = 0x4, scoped, tag = 'scoped memory for tpu_custom_call.1']
    #allocation4 [shape = 's32[1]{0}', space=sflag, size = 0x4, scoped, tag = 'scoped memory for tpu_custom_call.1']
    #allocation5 [shape = 'u8[12288]{0}', space=vmem, size = 0x3000, scoped, tag = 'input window, operand 1, single buffered']
    #allocation6 [shape = 's32[1]{0}', space=sflag, size = 0x4, scoped, tag = 'scoped memory for tpu_custom_call.1']
    #allocation7 [shape = 'u8[4096]{0}', space=vmem, size = 0x1000, scoped, tag = 'output window, operand 0, single buffered']
    %8 = vsyncpa [#allocation3], 0
    %9 = vsyncpa [#allocation6], 0
    %10 = vsyncpa [#allocation4], 0
    // Predicated region
    $region2: #{tpu_custom_call.1} parent=1 // pred_check
      _
    $region3: #{tpu_custom_call.1} parent=1 // pred_check_branch
      %12 = sbr.rel (0) target = $region5
    $region4: #{tpu_custom_call.1} parent=1 // pred_region
      %s14 = ssub.s32 128, 128
      %15 = vsyncadd [#allocation3], %s14
      %s17 = sshll.u32 [#allocation2], 4
      %s18 = int_to_ptr.vmem [resolvable:$true] %s17
      %20 = dma.hbm_to_vmem [thread:$0]  %s0, 128, %s18, [#allocation3]
    $region5: #{tpu_custom_call.1} parent=1 // pred_fallthru
      _
    // Predicated region
    $region6: #{tpu_custom_call.1} parent=1 // pred_check
      _
    $region7: #{tpu_custom_call.1} parent=1 // pred_check_branch
      %22 = sbr.rel (0) target = $region9
    $region8: #{tpu_custom_call.1} parent=1 // pred_region
      %s24 = ssub.s32 384, 384
      %25 = vsyncadd [#allocation6], %s24
      %s26 = sshll.u32 [#allocation5], 4
      %s27 = int_to_ptr.vmem [resolvable:$true] %s26
      %32 = dma.hbm_to_vmem [thread:$0]  %s1, 384, %s27, [#allocation6], 128, 128, 8
    $region9: #{tpu_custom_call.1} parent=1 // pred_fallthru
      _
    // Predicated region
    $region10: #{tpu_custom_call.1} parent=1 // pred_check
      _
    $region11: #{tpu_custom_call.1} parent=1 // pred_check_branch
      %34 = sbr.rel (0) target = $region13
    $region12: #{tpu_custom_call.1} parent=1 // pred_region
      _
    $region13: #{tpu_custom_call.1} parent=1 // pred_fallthru
      _
    // Predicated region
    $region14: #{tpu_custom_call.1} parent=1 // pred_check
      _
    $region15: #{tpu_custom_call.1} parent=1 // pred_check_branch
      %36 = sbr.rel (0) target = $region17
    $region16: #{tpu_custom_call.1} parent=1 // pred_region
      %37 = dma.done [#allocation3], 128
    $region17: #{tpu_custom_call.1} parent=1 // pred_fallthru
      _
    // Predicated region
    $region18: #{tpu_custom_call.1} parent=1 // pred_check
      _
    $region19: #{tpu_custom_call.1} parent=1 // pred_check_branch
      %39 = sbr.rel (0) target = $region21
    $region20: #{tpu_custom_call.1} parent=1 // pred_region
      %40 = dma.done [#allocation6], 384
    $region21: #{tpu_custom_call.1} parent=1 // pred_fallthru
      _
    %v41 = vld [vmem:[#allocation2] sm:$0xff]
    %v42 = vld [vmem:[#allocation5] sm:$0xff]
    %v43 = vld [vmem:[#allocation5 + $0x8] sm:$0xff]
    %v44 = vld [vmem:[#allocation5 + $0x10] sm:$0x1]
    %v45 = vld [vmem:[%s2] sm:$0x1]
    %v47 = vlaneseq
    %v48 = vshrl.u32 %v47, 7
    %v49 = vsub.s32 0, %v48
    %v50 = vrot.slane %v45, %v49
    %vm52 = vcmask 138240
    %v54 = vsel %vm52, %v41, 0
    %vm56 = vcmask 1040384
    %v58 = vsel %vm56, %v44, 0
    %60 = vmatprep.subr.mxu0 0.0
    %61 = vmatpush1.msra.mxu0 %v42
    %62 = vmatprep.subr.mxu0 0.0
    %63 = vmatpush1.msra.mxu0 %v43
    %64 = vmatprep.subr.mxu0 0.0
    %65 = vmatpush1.msra.mxu0 %v58
    %66 = vmatprep.subr.mxu0 0.0
    %67 = vmatpush1.msra.mxu0 0.0
    %68 = vmatprep.subr.mxu0 0.0
    %69 = vmatpush1.msra.mxu0 0.0
    %70 = vmatprep.subr.mxu0 0.0
    %71 = vmatpush1.msra.mxu0 0.0
    %72 = vmatprep.subr.mxu0 0.0
    %73 = vmatpush1.msra.mxu0 0.0
    %74 = vmatprep.subr.mxu0 0.0
    %75 = vmatpush1.msra.mxu0 0.0
    %76 = vmatprep.subr.mxu0 0.0
    %77 = vmatpush1.msra.mxu0 0.0
    %78 = vmatprep.subr.mxu0 0.0
    %79 = vmatpush1.msra.mxu0 0.0
    %80 = vmatprep.subr.mxu0 0.0
    %81 = vmatpush1.msra.mxu0 0.0
    %82 = vmatprep.subr.mxu0 0.0
    %83 = vmatpush1.msra.mxu0 0.0
    %84 = vmatprep.subr.mxu0 0.0
    %85 = vmatpush1.msra.mxu0 0.0
    %86 = vmatprep.subr.mxu0 0.0
    %87 = vmatpush1.msra.mxu0 0.0
    %88 = vmatprep.subr.mxu0 0.0
    %89 = vmatpush1.msra.mxu0 0.0
    %90 = vmatprep.subr.mxu0 0.0
    %91 = vmatpush1.msra.mxu0 0.0
    %92 = vmatprep.subr.mxu0 0.0
    %93 = vmatpush1.msra.mxu0 0.0
    %94 = vmatprep.subr.mxu0 0.0
    %95 = vmatpush1.msra.mxu0 0.0
    %96 = vmatprep.subr.mxu0 0.0
    %97 = vmatpush1.msra.mxu0 0.0
    %98 = vmatprep.subr.mxu0 0.0
    %99 = vmatpush1.msra.mxu0 0.0
    %100 = vmatprep.subr.mxu0 0.0
    %101 = vmatpush1.msra.mxu0 0.0
    %102 = vmatprep.subr.mxu0 0.0
    %103 = vmatpush1.msra.mxu0 0.0
    %104 = vmatprep.subr.mxu0 0.0
    %105 = vmatpush1.msra.mxu0 0.0
    %106 = vmatprep.subr.mxu0 0.0
    %107 = vmatpush1.msra.mxu0 0.0
    %108 = vmatprep.subr.mxu0 0.0
    %109 = vmatpush1.msra.mxu0 0.0
    %110 = vmatprep.subr.mxu0 0.0
    %111 = vmatpush1.msra.mxu0 0.0
    %112 = vmatprep.subr.mxu0 0.0
    %113 = vmatpush1.msra.mxu0 0.0
    %114 = vmatprep.subr.mxu0 0.0
    %115 = vmatpush1.msra.mxu0 0.0
    %116 = vmatprep.subr.mxu0 0.0
    %117 = vmatpush1.msra.mxu0 0.0
    %118 = vmatprep.subr.mxu0 0.0
    %119 = vmatpush1.msra.mxu0 0.0
    %120 = vmatprep.subr.mxu0 0.0
    %121 = vmatpush1.msra.mxu0 0.0
    %122 = vmatprep.subr.mxu0 0.0
    %123 = vmatpush1.msra.mxu0 0.0
    %124 = vmatprep.mubr.f32.mxu0 0.0
    %125 = vmatmul.mubr.f32.gmra.mrb[0].mxu0 %v54
    %v126 = vpop.f32.mrb[0].mxu0
    %v127 = vadd.f32 %v50, %v126
    %v128 = vpop.f32.mrb[0].mxu0
    %129 = vdwg.mxu0
    %v130 = vtanh.pop %v127
    %131 = vst.msk [vmem:[#allocation7] sm:$0xff] %vm52, %v130
    // Predicated region
    $region22: #{tpu_custom_call.1} parent=1 // pred_check
      _
    $region23: #{tpu_custom_call.1} parent=1 // pred_check_branch
      %133 = sbr.rel (0) target = $region25
    $region24: #{tpu_custom_call.1} parent=1 // pred_region
      %s135 = ssub.s32 128, 128
      %136 = vsyncadd [#allocation4], %s135
      %s138 = sshll.u32 [#allocation7], 4
      %s139 = int_to_ptr.vmem [resolvable:$true] %s138
      %141 = dma.vmem_to_hbm [thread:$0]  %s139, 128, %s3, [#allocation4]
    $region25: #{tpu_custom_call.1} parent=1 // pred_fallthru
      _
    // Predicated region
    $region26: #{tpu_custom_call.1} parent=1 // pred_check
      _
    $region27: #{tpu_custom_call.1} parent=1 // pred_check_branch
      %143 = sbr.rel (0) target = $region29
    $region28: #{tpu_custom_call.1} parent=1 // pred_region
      %144 = dma.done [#allocation4], 128
    $region29: #{tpu_custom_call.1} parent=1 // pred_fallthru
      _
    %145 = vsyncpa [#allocation3], 1
    %146 = vsyncpa [#allocation6], 1
    %147 = vsyncpa [#allocation4], 1

</llo_original>
